<compile_context>
chip_gen: v6e
topology: v6e:2x2x1
jax: 0.10.0
libtpu: 0.0.40
codegen_flags: <defaults>
</compile_context>

<pallas_src>
import functools

import jax
import jax.numpy as jnp
from jax.experimental import pallas as pl
from jax.experimental.pallas import tpu as pltpu

LANE = 128     # vreg lane width: hidden/output dims padded to a multiple of this
SUBLANE = 8    # f32 sublane width


def _round_up(n, m):
    return ((n + m - 1) // m) * m


def _pad2d(a, rows, cols):
    """Zero-pad a 2-D array up to (rows, cols). Zeros keep the math exact."""
    return jnp.zeros((rows, cols), a.dtype).at[: a.shape[0], : a.shape[1]].set(a)


def dqn_kernel(x_ref, w1_ref, w2_ref, w3_ref, b_ref, o_ref):
    # bf16 MXU operands, f32 accumulation; bias-add + ReLU run on the VPU.
    # b_ref packs [b1; b2; b3] as rows 0..2 of a single (8, BH) f32 tile.
    H = w1_ref.shape[1]
    N = w3_ref.shape[1]
    b = b_ref[...]
    x = x_ref[...]
    h1 = jnp.dot(x, w1_ref[...], preferred_element_type=jnp.float32) + b[0:1, :H]
    h1 = jnp.maximum(h1, 0.0).astype(jnp.bfloat16)
    h2 = jnp.dot(h1, w2_ref[...], preferred_element_type=jnp.float32) + b[1:2, :H]
    h2 = jnp.maximum(h2, 0.0).astype(jnp.bfloat16)
    out = jnp.dot(h2, w3_ref[...], preferred_element_type=jnp.float32) + b[2:3, :N]
    o_ref[...] = out.astype(o_ref.dtype)


def prepare_params(params):
    """One-time padding + bf16 cast of the DQN parameters.

    Hoisted out of the per-call forward so the forward only touches x.
    Returns (padded_arrays, (in_size, hidden_size, output_size)).
    """
    w1, b1, w2, b2, w3, b3 = params
    in_size, hidden = w1.shape
    out_size = w3.shape[1]

    # Contraction dim: only sublane-align (MXU pads the contraction internally,
    # so 128-padding K buys nothing and costs 8x x/w1 traffic at in=16).
    K = _round_up(in_size, SUBLANE)
    # Hidden/output dims: lane-dense (unmasked vst, full MXU tiles).
    H = _round_up(hidden, LANE)
    N = _round_up(out_size, LANE)
    BH = max(H, N)

    w1p = _pad2d(w1.astype(jnp.bfloat16), K, H)
    w2p = _pad2d(w2.astype(jnp.bfloat16), H, H)
    w3p = _pad2d(w3.astype(jnp.bfloat16), H, N)

    b_all = jnp.zeros((SUBLANE, BH), jnp.float32)
    b_all = b_all.at[0, :hidden].set(b1.reshape(-1).astype(jnp.float32))
    b_all = b_all.at[1, :hidden].set(b2.reshape(-1).astype(jnp.float32))
    b_all = b_all.at[2, :out_size].set(b3.reshape(-1).astype(jnp.float32))
    return (w1p, w2p, w3p, b_all), (in_size, hidden, out_size)


def _pick_tb(batch):
    """Batch-tile rows per grid step, sized per TPU generation."""
    b8 = _round_up(max(batch, 1), SUBLANE)
    try:
        kind = jax.devices()[0].device_kind.lower()
    except Exception:
        kind = ""
    if "v7" in kind and b8 >= 256:
        # v7x: 2 TensorCores -> 2 "parallel" tiles; >=256-row per-core tiles for big
        # batches, capped at 512 rows to bound the f32 out-tile VMEM footprint.
        return min(_round_up((b8 + 1) // 2, SUBLANE), 512)
    # v5e/v6e: single TensorCore -> the grid is a serial loop, so collapse to one
    # step (up to 512 rows) and avoid the ~0.35-0.6us per-step pipeline overhead;
    # a 256+-row LHS also fills the 256-wide MXU rows on v6e.
    return min(b8, 512)


@functools.partial(jax.jit, static_argnames=("tb", "hidden", "out_size"))
def _dqn_forward_impl(x, w1p, w2p, w3p, b_all, *, tb, hidden, out_size):
    B = x.shape[0]
    x2d = x.reshape(B, -1)                        # like PyTorch x.view(B, -1)
    in_size = x2d.shape[1]
    K, H = w1p.shape
    N = w3p.shape[1]
    BH = b_all.shape[1]

    TB = min(tb, _round_up(B, SUBLANE))
    B_pad = _round_up(B, TB)

    xb = x2d.astype(jnp.bfloat16)
    if (B_pad, K) != (B, in_size):                # only pad x when actually needed
        xb = _pad2d(xb, B_pad, K)

    grid = (B_pad // TB,)

    # Advisory cost for XLA's scheduler: real (unpadded) FLOPs / bytes.
    flops = 2 * B * (in_size * hidden + hidden * hidden + hidden * out_size)
    bytes_accessed = (
        B * in_size * 2
        + (in_size * hidden + hidden * hidden + hidden * out_size) * 2
        + (2 * hidden + out_size) * 4
        + B * out_size * 4
    )

    # Explicit VMEM budget: double-buffered x/out tiles + resident weights/biases,
    # plus headroom. Re-derived automatically when hidden grows to 512-1024.
    vmem_need = (
        2 * (TB * K * 2 + TB * N * 4)
        + 2 * ((K * H + H * H + H * N) * 2 + SUBLANE * BH * 4)
    )
    vmem_limit = int(min(max(vmem_need + (8 << 20), 16 << 20), 64 << 20))

    # Weights/biases: same block every grid step -> VMEM-resident, DMA'd once.
    # NOTE: at real DQN widths add pipeline_mode=pl.Buffered(1) here to drop the
    # second (unused) pipeline buffer of these resident operands and halve their VMEM.
    resident = lambda shape: pl.BlockSpec(shape, lambda i: (0, 0),
                                          memory_space=pltpu.VMEM)

    out_pad = pl.pallas_call(
        dqn_kernel,
        out_shape=jax.ShapeDtypeStruct((B_pad, N), jnp.float32),
        grid=grid,
        in_specs=[
            pl.BlockSpec((TB, K), lambda i: (i, 0), memory_space=pltpu.VMEM),  # x tile
            resident((K, H)),
            resident((H, H)),
            resident((H, N)),
            resident((SUBLANE, BH)),                                           # fused biases
        ],
        out_specs=pl.BlockSpec((TB, N), lambda i: (i, 0), memory_space=pltpu.VMEM),
        compiler_params=pltpu.CompilerParams(
            # Batch tiles are independent -> shard across both TensorCores on v7x.
            dimension_semantics=("parallel",),
            vmem_limit_bytes=vmem_limit,
        ),
        cost_estimate=pl.CostEstimate(
            flops=flops, transcendentals=0, bytes_accessed=bytes_accessed),
    )(xb, w1p, w2p, w3p, b_all)

    # Drop row/column padding; keep f32 Q-values for the TD-loss path.
    return out_pad[:B, :out_size]


def dqn_forward(x, prepared):
    """Forward of DQN given pre-padded params from prepare_params()."""
    padded, (_in_size, hidden, out_size) = prepared
    tb = _pick_tb(x.shape[0])
    return _dqn_forward_impl(x, *padded, tb=tb, hidden=hidden, out_size=out_size)


def init_dqn_params(key, input_size, hidden_size, output_size):
    """Deterministic init mimicking PyTorch nn.Linear default (U[-1/sqrt(fan_in), 1/sqrt(fan_in)])."""
    ks = jax.random.split(key, 6)

    def linear(kw, kb, fan_in, fan_out):
        bound = 1.0 / jnp.sqrt(fan_in)
        w = jax.random.uniform(kw, (fan_in, fan_out), jnp.float32, -bound, bound)
        b = jax.random.uniform(kb, (1, fan_out), jnp.float32, -bound, bound)
        return w, b

    w1, b1 = linear(ks[0], ks[1], input_size, hidden_size)
    w2, b2 = linear(ks[2], ks[3], hidden_size, hidden_size)
    w3, b3 = linear(ks[4], ks[5], hidden_size, output_size)
    return (w1, b1, w2, b2, w3, b3)


def dqn_reference_f32(x, params):
    w1, b1, w2, b2, w3, b3 = params
    x2d = x.reshape(x.shape[0], -1).astype(jnp.float32)
    h1 = jnp.maximum(x2d @ w1 + b1, 0.0)
    h2 = jnp.maximum(h1 @ w2 + b2, 0.0)
    return h2 @ w3 + b3


def dqn_reference_bf16(x, params):
    # Mirrors the kernel's numerics: bf16 MXU operands, f32 accumulation.
    w1, b1, w2, b2, w3, b3 = params
    x2d = x.reshape(x.shape[0], -1).astype(jnp.bfloat16)
    h1 = jnp.maximum(
        jnp.dot(x2d, w1.astype(jnp.bfloat16), preferred_element_type=jnp.float32) + b1, 0.0
    ).astype(jnp.bfloat16)
    h2 = jnp.maximum(
        jnp.dot(h1, w2.astype(jnp.bfloat16), preferred_element_type=jnp.float32) + b2, 0.0
    ).astype(jnp.bfloat16)
    return jnp.dot(h2, w3.astype(jnp.bfloat16), preferred_element_type=jnp.float32) + b3


if __name__ == "__main__":
    key = jax.random.PRNGKey(0)
    k_x, k_p = jax.random.split(key)

    batch = 256          # replay-buffer sized batch: fills MXU rows, amortizes call overhead
    input_size = 16      # state (4, 4) flattened, like x.view(B, -1)
    hidden_size = 32
    output_size = 4

    # State arrives as (B, 4, 4) and is flattened to (B, 16).
    x = jax.random.normal(k_x, (batch, 4, 4), jnp.float32)
    params = init_dqn_params(k_p, input_size, hidden_size, output_size)

    # One-time: pad + bf16-cast weights / fuse biases (hoisted out of the forward).
    prepared = prepare_params(params)

    out = jax.block_until_ready(dqn_forward(x, prepared))

    ref_bf16 = dqn_reference_bf16(x, params)   # same numerics as the kernel
    ref_f32 = dqn_reference_f32(x, params)     # original module's f32 math
    assert out.shape == (batch, output_size)
    assert jnp.allclose(out, ref_bf16, atol=1e-4, rtol=1e-4), "mismatch vs bf16 reference"
    assert jnp.allclose(out, ref_f32, atol=5e-2, rtol=5e-2), "mismatch vs f32 reference"

    print("KERNEL_OK")
</pallas_src>

<mosaic_0001>
module attributes {stable_mosaic.version = 11 : i64} {
  func.func @dqn_kernel(%arg0: i32, %arg1: memref<256x16xbf16, #tpu.memory_space<vmem>>, %arg2: memref<16x128xbf16, #tpu.memory_space<vmem>>, %arg3: memref<128x128xbf16, #tpu.memory_space<vmem>>, %arg4: memref<128x128xbf16, #tpu.memory_space<vmem>>, %arg5: memref<8x128xf32, #tpu.memory_space<vmem>>, %arg6: memref<256x128xf32, #tpu.memory_space<vmem>>) attributes {dimension_semantics = [#tpu.dimension_semantics<parallel>], iteration_bounds = array<i64: 1>, scalar_prefetch = 0 : i64, scratch_operands = 0 : i64, tpu.core_type = #tpu.core_type<tc>, window_params = [{transform_indices = @transform_0, window_bounds = array<i64: 256, 16>}, {pipeline_mode = #tpu.pipeline_mode<synchronous>, transform_indices = @transform_1, window_bounds = array<i64: 16, 128>}, {pipeline_mode = #tpu.pipeline_mode<synchronous>, transform_indices = @transform_2, window_bounds = array<i64: 128, 128>}, {pipeline_mode = #tpu.pipeline_mode<synchronous>, transform_indices = @transform_3, window_bounds = array<i64: 128, 128>}, {pipeline_mode = #tpu.pipeline_mode<synchronous>, transform_indices = @transform_4, window_bounds = array<i64: 8, 128>}, {transform_indices = @transform_5, window_bounds = array<i64: 256, 128>}]} {
    %c0 = arith.constant 0 : index
    %c0_0 = arith.constant 0 : index
    %0 = vector.load %arg5[%c0, %c0_0] : memref<8x128xf32, #tpu.memory_space<vmem>>, vector<8x128xf32>
    %c0_1 = arith.constant 0 : index
    %c0_2 = arith.constant 0 : index
    %1 = vector.load %arg1[%c0_1, %c0_2] : memref<256x16xbf16, #tpu.memory_space<vmem>>, vector<256x16xbf16>
    %c0_3 = arith.constant 0 : index
    %c0_4 = arith.constant 0 : index
    %2 = vector.load %arg2[%c0_3, %c0_4] : memref<16x128xbf16, #tpu.memory_space<vmem>>, vector<16x128xbf16>
    %cst = arith.constant dense<0.000000e+00> : vector<256x128xf32>
    %3 = tpu.matmul %1, %2, %cst {dimension_numbers = #tpu.dot_dimension_numbers<[1], [0], [0], [1], [0, 0, 1, 1], [], []>} : vector<256x16xbf16>, vector<16x128xbf16>, vector<256x128xf32> -> vector<256x128xf32>
    %4 = vector.extract_strided_slice %0 {offsets = [0, 0], sizes = [1, 128], strides = [1, 1]} : vector<8x128xf32> to vector<1x128xf32>
    %5 = vector.broadcast %4 : vector<1x128xf32> to vector<256x128xf32>
    %6 = arith.addf %3, %5 : vector<256x128xf32>
    %cst_5 = arith.constant 0.000000e+00 : f32
    %7 = vector.broadcast %cst_5 : f32 to vector<256x128xf32>
    %8 = arith.maximumf %6, %7 : vector<256x128xf32>
    %9 = arith.truncf %8 : vector<256x128xf32> to vector<256x128xbf16>
    %c0_6 = arith.constant 0 : index
    %c0_7 = arith.constant 0 : index
    %10 = vector.load %arg3[%c0_6, %c0_7] : memref<128x128xbf16, #tpu.memory_space<vmem>>, vector<128x128xbf16>
    %cst_8 = arith.constant dense<0.000000e+00> : vector<256x128xf32>
    %11 = tpu.matmul %9, %10, %cst_8 {dimension_numbers = #tpu.dot_dimension_numbers<[1], [0], [0], [1], [0, 0, 1, 1], [], []>} : vector<256x128xbf16>, vector<128x128xbf16>, vector<256x128xf32> -> vector<256x128xf32>
    %12 = vector.extract_strided_slice %0 {offsets = [1, 0], sizes = [1, 128], strides = [1, 1]} : vector<8x128xf32> to vector<1x128xf32>
    %13 = vector.broadcast %12 : vector<1x128xf32> to vector<256x128xf32>
    %14 = arith.addf %11, %13 : vector<256x128xf32>
    %cst_9 = arith.constant 0.000000e+00 : f32
    %15 = vector.broadcast %cst_9 : f32 to vector<256x128xf32>
    %16 = arith.maximumf %14, %15 : vector<256x128xf32>
    %17 = arith.truncf %16 : vector<256x128xf32> to vector<256x128xbf16>
    %c0_10 = arith.constant 0 : index
    %c0_11 = arith.constant 0 : index
    %18 = vector.load %arg4[%c0_10, %c0_11] : memref<128x128xbf16, #tpu.memory_space<vmem>>, vector<128x128xbf16>
    %cst_12 = arith.constant dense<0.000000e+00> : vector<256x128xf32>
    %19 = tpu.matmul %17, %18, %cst_12 {dimension_numbers = #tpu.dot_dimension_numbers<[1], [0], [0], [1], [0, 0, 1, 1], [], []>} : vector<256x128xbf16>, vector<128x128xbf16>, vector<256x128xf32> -> vector<256x128xf32>
    %20 = vector.extract_strided_slice %0 {offsets = [2, 0], sizes = [1, 128], strides = [1, 1]} : vector<8x128xf32> to vector<1x128xf32>
    %21 = vector.broadcast %20 : vector<1x128xf32> to vector<256x128xf32>
    %22 = arith.addf %19, %21 : vector<256x128xf32>
    %c0_13 = arith.constant 0 : index
    %c0_14 = arith.constant 0 : index
    %23 = vector.load %arg6[%c0_13, %c0_14] : memref<256x128xf32, #tpu.memory_space<vmem>>, vector<256x128xf32>
    tpu.vector_store %arg6[%c0_13, %c0_14], %22 {strides = array<i32>} : memref<256x128xf32, #tpu.memory_space<vmem>>, vector<256x128xf32>,
    return
  }
  func.func @transform_0(%arg0: i32) -> (i32, i32) {
    %c0_i32 = arith.constant 0 : i32
    %c0_i32_0 = arith.constant 0 : i32
    return %arg0, %c0_i32 : i32, i32
  }
  func.func @transform_1(%arg0: i32) -> (i32, i32) {
    %c0_i32 = arith.constant 0 : i32
    %c0_i32_0 = arith.constant 0 : i32
    %c0_i32_1 = arith.constant 0 : i32
    return %c0_i32, %c0_i32_0 : i32, i32
  }
  func.func @transform_2(%arg0: i32) -> (i32, i32) {
    %c0_i32 = arith.constant 0 : i32
    %c0_i32_0 = arith.constant 0 : i32
    %c0_i32_1 = arith.constant 0 : i32
    return %c0_i32, %c0_i32_0 : i32, i32
  }
  func.func @transform_3(%arg0: i32) -> (i32, i32) {
    %c0_i32 = arith.constant 0 : i32
    %c0_i32_0 = arith.constant 0 : i32
    %c0_i32_1 = arith.constant 0 : i32
    return %c0_i32, %c0_i32_0 : i32, i32
  }
  func.func @transform_4(%arg0: i32) -> (i32, i32) {
    %c0_i32 = arith.constant 0 : i32
    %c0_i32_0 = arith.constant 0 : i32
    %c0_i32_1 = arith.constant 0 : i32
    return %c0_i32, %c0_i32_0 : i32, i32
  }
  func.func @transform_5(%arg0: i32) -> (i32, i32) {
    %c0_i32 = arith.constant 0 : i32
    %c0_i32_0 = arith.constant 0 : i32
    return %arg0, %c0_i32 : i32, i32
  }
}

</mosaic_0001>

<llo_original>
// kernel: _dqn_forward_impl.1
$region0: #{_dqn_forward_impl.1}
  #allocation0 [shape = 'u32[]', space=smem, size = 0x4, offset = 0x4, fixed_abs, tag = 'smem constant byte address 0x4 - core index']
  #allocation1 [shape = 'u32[144,128]{1,0:T(1,128)}', space=vmem, size = 0x12000, scoped, tag = 'internal scratch']
  %s0 = inlined_call_operand.vmem [shape: bf16[256,16], index: 0, kind: input, shape index: {}]
  %s1 = inlined_call_operand.vmem [shape: bf16[16,128], index: 1, kind: input, shape index: {}]
  %s2 = inlined_call_operand.vmem [shape: bf16[128,128], index: 2, kind: input, shape index: {}]
  %s3 = inlined_call_operand.vmem [shape: bf16[128,128], index: 3, kind: input, shape index: {}]
  %s4 = inlined_call_operand.vmem [shape: f32[8,128], index: 4, kind: input, shape index: {}]
  %s5 = inlined_call_operand.vmem [shape: f32[256,128], index: 5, kind: output, shape index: {}]
  %s6 = sld [smem:[#allocation0]]
  $region30: #{_dqn_forward_impl.1} parent=0
    _
  %s8 = ssub.s32 1, %s6
  %s9 = scalar_select 0, %s8, %s6
  // Predicated region
  $region2: #{_dqn_forward_impl.1} parent=0 // pred_check
    _
  $region3: #{_dqn_forward_impl.1} parent=0 // pred_check_branch
    %11 = sbr.rel (0) target = $region5
  $region4: #{_dqn_forward_impl.1} parent=0 // pred_region
    _
  $region5: #{_dqn_forward_impl.1} parent=0 // pred_fallthru
    _
  // Predicated region
  $region6: #{_dqn_forward_impl.1} parent=0 // pred_check
    _
  $region7: #{_dqn_forward_impl.1} parent=0 // pred_check_branch
    %13 = sbr.rel (0) target = $region9
  $region8: #{_dqn_forward_impl.1} parent=0 // pred_region
    _
  $region9: #{_dqn_forward_impl.1} parent=0 // pred_fallthru
    _
  // Predicated region
  $region10: #{_dqn_forward_impl.1} parent=0 // pred_check
    _
  $region11: #{_dqn_forward_impl.1} parent=0 // pred_check_branch
    %15 = sbr.rel (0) target = $region13
  $region12: #{_dqn_forward_impl.1} parent=0 // pred_region
    _
  $region13: #{_dqn_forward_impl.1} parent=0 // pred_fallthru
    _
  // Predicated region
  $region14: #{_dqn_forward_impl.1} parent=0 // pred_check
    _
  $region15: #{_dqn_forward_impl.1} parent=0 // pred_check_branch
    %17 = sbr.rel (0) target = $region17
  $region16: #{_dqn_forward_impl.1} parent=0 // pred_region
    _
  $region17: #{_dqn_forward_impl.1} parent=0 // pred_fallthru
    _
  // Predicated region
  $region18: #{_dqn_forward_impl.1} parent=0 // pred_check
    _
  $region19: #{_dqn_forward_impl.1} parent=0 // pred_check_branch
    %19 = sbr.rel (0) target = $region21
  $region20: #{_dqn_forward_impl.1} parent=0 // pred_region
    _
  $region21: #{_dqn_forward_impl.1} parent=0 // pred_fallthru
    _
  %v21 = vld [vmem:[%s4] sm:$0xff]
  %v22 = vld [vmem:[%s0] sm:$0xf]
  %v23 = vld [vmem:[%s0 + $0x4] sm:$0xf]
  %v24 = vld [vmem:[%s0 + $0x8] sm:$0xf]
  %v25 = vld [vmem:[%s0 + $0xc] sm:$0xf]
  %v26 = vld [vmem:[%s0 + $0x10] sm:$0xf]
  %v27 = vld [vmem:[%s0 + $0x14] sm:$0xf]
  %v28 = vld [vmem:[%s0 + $0x18] sm:$0xf]
  %v29 = vld [vmem:[%s0 + $0x1c] sm:$0xf]
  %v30 = vld [vmem:[%s0 + $0x20] sm:$0xf]
  %v31 = vld [vmem:[%s0 + $0x24] sm:$0xf]
  %v32 = vld [vmem:[%s0 + $0x28] sm:$0xf]
  %v33 = vld [vmem:[%s0 + $0x2c] sm:$0xf]
  %v34 = vld [vmem:[%s0 + $0x30] sm:$0xf]
  %v35 = vld [vmem:[%s0 + $0x34] sm:$0xf]
  %v36 = vld [vmem:[%s0 + $0x38] sm:$0xf]
  %v37 = vld [vmem:[%s0 + $0x3c] sm:$0xf]
  %v38 = vld [vmem:[%s0 + $0x40] sm:$0xf]
  %v39 = vld [vmem:[%s0 + $0x44] sm:$0xf]
  %v40 = vld [vmem:[%s0 + $0x48] sm:$0xf]
  %v41 = vld [vmem:[%s0 + $0x4c] sm:$0xf]
  %v42 = vld [vmem:[%s0 + $0x50] sm:$0xf]
  %v43 = vld [vmem:[%s0 + $0x54] sm:$0xf]
  %v44 = vld [vmem:[%s0 + $0x58] sm:$0xf]
  %v45 = vld [vmem:[%s0 + $0x5c] sm:$0xf]
  %v46 = vld [vmem:[%s0 + $0x60] sm:$0xf]
  %v47 = vld [vmem:[%s0 + $0x64] sm:$0xf]
  %v48 = vld [vmem:[%s0 + $0x68] sm:$0xf]
  %v49 = vld [vmem:[%s0 + $0x6c] sm:$0xf]
  %v50 = vld [vmem:[%s0 + $0x70] sm:$0xf]
  %v51 = vld [vmem:[%s0 + $0x74] sm:$0xf]
  %v52 = vld [vmem:[%s0 + $0x78] sm:$0xf]
  %v53 = vld [vmem:[%s0 + $0x7c] sm:$0xf]
  %v54 = vld [vmem:[%s1] sm:$0xf]
  %v55 = vld [vmem:[%s1 + $0x4] sm:$0xf]
  %v56 = vlaneseq
  %v57 = vshrl.u32 %v56, 7
  %v58 = vsub.s32 0, %v57
  %v59 = vrot.slane %v21, %v58
  %v92 = vunpack.c.l.b16 %v22
  %v93 = vunpack.c.l.b16 %v23
  %v94 = vunpack.c.l.b16 %v24
  %v95 = vunpack.c.l.b16 %v25
  %v96 = vunpack.c.l.b16 %v26
  %v97 = vunpack.c.l.b16 %v27
  %v98 = vunpack.c.l.b16 %v28
  %v99 = vunpack.c.l.b16 %v29
  %v100 = vunpack.c.l.b16 %v30
  %v101 = vunpack.c.l.b16 %v31
  %v102 = vunpack.c.l.b16 %v32
  %v103 = vunpack.c.l.b16 %v33
  %v104 = vunpack.c.l.b16 %v34
  %v105 = vunpack.c.l.b16 %v35
  %v106 = vunpack.c.l.b16 %v36
  %v107 = vunpack.c.l.b16 %v37
  %v108 = vunpack.c.l.b16 %v38
  %v109 = vunpack.c.l.b16 %v39
  %v110 = vunpack.c.l.b16 %v40
  %v111 = vunpack.c.l.b16 %v41
  %v112 = vunpack.c.l.b16 %v42
  %v113 = vunpack.c.l.b16 %v43
  %v114 = vunpack.c.l.b16 %v44
  %v115 = vunpack.c.l.b16 %v45
  %v116 = vunpack.c.l.b16 %v46
  %v117 = vunpack.c.l.b16 %v47
  %v118 = vunpack.c.l.b16 %v48
  %v119 = vunpack.c.l.b16 %v49
  %v120 = vunpack.c.l.b16 %v50
  %v121 = vunpack.c.l.b16 %v51
  %v122 = vunpack.c.l.b16 %v52
  %v123 = vunpack.c.l.b16 %v53
  %v124 = vpack.c.b16 %v93, %v92
  %v125 = vpack.c.b16 %v95, %v94
  %v126 = vpack.c.b16 %v97, %v96
  %v127 = vpack.c.b16 %v99, %v98
  %v128 = vpack.c.b16 %v101, %v100
  %v129 = vpack.c.b16 %v103, %v102
  %v130 = vpack.c.b16 %v105, %v104
  %v131 = vpack.c.b16 %v107, %v106
  %v132 = vpack.c.b16 %v109, %v108
  %v133 = vpack.c.b16 %v111, %v110
  %v134 = vpack.c.b16 %v113, %v112
  %v135 = vpack.c.b16 %v115, %v114
  %v136 = vpack.c.b16 %v117, %v116
  %v137 = vpack.c.b16 %v119, %v118
  %v138 = vpack.c.b16 %v121, %v120
  %v139 = vpack.c.b16 %v123, %v122
  %v142 = vunpack.c.l.b16 %v54
  %v143 = vunpack.c.l.b16 %v55
  %v144 = vpack.c.b16 %v143, %v142
  %vm146 = vcmask 130048
  %v148 = vsel %vm146, %v124, 0
  %v151 = vsel %vm146, %v125, 0
  %v154 = vsel %vm146, %v126, 0
  %v157 = vsel %vm146, %v127, 0
  %v160 = vsel %vm146, %v128, 0
  %v163 = vsel %vm146, %v129, 0
  %v166 = vsel %vm146, %v130, 0
  %v169 = vsel %vm146, %v131, 0
  %v172 = vsel %vm146, %v132, 0
  %v175 = vsel %vm146, %v133, 0
  %v178 = vsel %vm146, %v134, 0
  %v181 = vsel %vm146, %v135, 0
  %v184 = vsel %vm146, %v136, 0
  %v187 = vsel %vm146, %v137, 0
  %v190 = vsel %vm146, %v138, 0
  %v193 = vsel %vm146, %v139, 0
  %195 = vmatprep.subr.bf16.mxu0 0
  %196 = vmatpush1.bf16.msra.mxu0 0
  %197 = vmatprep.subr.bf16.mxu0 0
  %198 = vmatpush1.bf16.msra.mxu0 0
  %199 = vmatprep.subr.bf16.mxu0 0
  %200 = vmatpush1.bf16.msra.mxu0 0
  %201 = vmatprep.subr.bf16.mxu0 0
  %202 = vmatpush1.bf16.msra.mxu0 0
  %203 = vmatprep.subr.bf16.mxu0 0
  %204 = vmatpush1.bf16.msra.mxu0 0
  %205 = vmatprep.subr.bf16.mxu0 0
  %206 = vmatpush1.bf16.msra.mxu0 0
  %207 = vmatprep.subr.bf16.mxu0 0
  %208 = vmatpush1.bf16.msra.mxu0 0
  %209 = vmatprep.subr.bf16.mxu0 0
  %210 = vmatpush1.bf16.msra.mxu0 %v144
  %211 = vmatprep.subr.bf16.mxu0 0
  %212 = vmatpush2.bf16.msra.mxu0 0
  %213 = vmatprep.subr.bf16.mxu0 0
  %214 = vmatpush2.bf16.msra.mxu0 0
  %215 = vmatprep.subr.bf16.mxu0 0
  %216 = vmatpush2.bf16.msra.mxu0 0
  %217 = vmatprep.subr.bf16.mxu0 0
  %218 = vmatpush2.bf16.msra.mxu0 0
  %219 = vmatprep.subr.bf16.mxu0 0
  %220 = vmatpush2.bf16.msra.mxu0 0
  %221 = vmatprep.subr.bf16.mxu0 0
  %222 = vmatpush2.bf16.msra.mxu0 0
  %223 = vmatprep.subr.bf16.mxu0 0
  %224 = vmatpush2.bf16.msra.mxu0 0
  %225 = vmatprep.subr.bf16.mxu0 0
  %226 = vmatpush2.bf16.msra.mxu0 0
  %227 = vmatprep.mubr.bf16.mxu0 0
  %228 = vmatmul.mubr.bf16.gmra.mxu0 %v148
  %v229 = vpop.f32.mrf.mxu0
  %v230 = vadd.f32 %v59, %v229
  %v231 = vpop.f32.mrf.mxu0
  %v232 = vpop.f32.mrf.mxu0
  %v233 = vadd.f32 %v59, %v232
  %v234 = vpop.f32.mrf.mxu0
  %235 = vmatprep.mubr.bf16.mxu0 0
  %236 = vmatmul.mubr.bf16.gmra.mxu0 %v151
  %v237 = vpop.f32.mrf.mxu0
  %v238 = vadd.f32 %v59, %v237
  %v239 = vpop.f32.mrf.mxu0
  %v240 = vpop.f32.mrf.mxu0
  %v241 = vadd.f32 %v59, %v240
  %v242 = vpop.f32.mrf.mxu0
  %243 = vmatprep.mubr.bf16.mxu0 0
  %244 = vmatmul.mubr.bf16.gmra.mxu0 %v154
  %v245 = vpop.f32.mrf.mxu0
  %v246 = vadd.f32 %v59, %v245
  %v247 = vpop.f32.mrf.mxu0
  %v248 = vpop.f32.mrf.mxu0
  %v249 = vadd.f32 %v59, %v248
  %v250 = vpop.f32.mrf.mxu0
  %251 = vmatprep.mubr.bf16.mxu0 0
  %252 = vmatmul.mubr.bf16.gmra.mxu0 %v157
  %v253 = vpop.f32.mrf.mxu0
  %v254 = vadd.f32 %v59, %v253
  %v255 = vpop.f32.mrf.mxu0
  %v256 = vpop.f32.mrf.mxu0
  %v257 = vadd.f32 %v59, %v256
  %v258 = vpop.f32.mrf.mxu0
  %259 = vmatprep.mubr.bf16.mxu0 0
  %260 = vmatmul.mubr.bf16.gmra.mxu0 %v160
  %v261 = vpop.f32.mrf.mxu0
  %v262 = vadd.f32 %v59, %v261
  %v263 = vpop.f32.mrf.mxu0
  %v264 = vpop.f32.mrf.mxu0
  %v265 = vadd.f32 %v59, %v264
  %v266 = vpop.f32.mrf.mxu0
  %267 = vmatprep.mubr.bf16.mxu0 0
  %268 = vmatmul.mubr.bf16.gmra.mxu0 %v163
  %v269 = vpop.f32.mrf.mxu0
  %v270 = vadd.f32 %v59, %v269
  %v271 = vpop.f32.mrf.mxu0
  %v272 = vpop.f32.mrf.mxu0
  %v273 = vadd.f32 %v59, %v272
  %v274 = vpop.f32.mrf.mxu0
  %275 = vmatprep.mubr.bf16.mxu0 0
  %276 = vmatmul.mubr.bf16.gmra.mxu0 %v166
  %v277 = vpop.f32.mrf.mxu0
  %v278 = vadd.f32 %v59, %v277
  %v279 = vpop.f32.mrf.mxu0
  %v280 = vpop.f32.mrf.mxu0
  %v281 = vadd.f32 %v59, %v280
  %v282 = vpop.f32.mrf.mxu0
  %283 = vmatprep.mubr.bf16.mxu0 0
  %284 = vmatmul.mubr.bf16.gmra.mxu0 %v169
  %v285 = vpop.f32.mrf.mxu0
  %v286 = vadd.f32 %v59, %v285
  %v287 = vpop.f32.mrf.mxu0
  %v288 = vpop.f32.mrf.mxu0
  %v289 = vadd.f32 %v59, %v288
  %v290 = vpop.f32.mrf.mxu0
  %291 = vmatprep.mubr.bf16.mxu0 0
  %292 = vmatmul.mubr.bf16.gmra.mxu0 %v172
  %v293 = vpop.f32.mrf.mxu0
  %v294 = vadd.f32 %v59, %v293
  %v295 = vpop.f32.mrf.mxu0
  %v296 = vpop.f32.mrf.mxu0
  %v297 = vadd.f32 %v59, %v296
  %v298 = vpop.f32.mrf.mxu0
  %299 = vmatprep.mubr.bf16.mxu0 0
  %300 = vmatmul.mubr.bf16.gmra.mxu0 %v175
  %v301 = vpop.f32.mrf.mxu0
  %v302 = vadd.f32 %v59, %v301
  %v303 = vpop.f32.mrf.mxu0
  %v304 = vpop.f32.mrf.mxu0
  %v305 = vadd.f32 %v59, %v304
  %v306 = vpop.f32.mrf.mxu0
  %307 = vmatprep.mubr.bf16.mxu0 0
  %308 = vmatmul.mubr.bf16.gmra.mxu0 %v178
  %v309 = vpop.f32.mrf.mxu0
  %v310 = vadd.f32 %v59, %v309
  %v311 = vpop.f32.mrf.mxu0
  %v312 = vpop.f32.mrf.mxu0
  %v313 = vadd.f32 %v59, %v312
  %v314 = vpop.f32.mrf.mxu0
  %315 = vmatprep.mubr.bf16.mxu0 0
  %316 = vmatmul.mubr.bf16.gmra.mxu0 %v181
  %v317 = vpop.f32.mrf.mxu0
  %v318 = vadd.f32 %v59, %v317
  %v319 = vpop.f32.mrf.mxu0
  %v320 = vpop.f32.mrf.mxu0
  %v321 = vadd.f32 %v59, %v320
  %v322 = vpop.f32.mrf.mxu0
  %323 = vmatprep.mubr.bf16.mxu0 0
  %324 = vmatmul.mubr.bf16.gmra.mxu0 %v184
  %v325 = vpop.f32.mrf.mxu0
  %v326 = vadd.f32 %v59, %v325
  %v327 = vpop.f32.mrf.mxu0
  %v328 = vpop.f32.mrf.mxu0
  %v329 = vadd.f32 %v59, %v328
  %v330 = vpop.f32.mrf.mxu0
  %331 = vmatprep.mubr.bf16.mxu0 0
  %332 = vmatmul.mubr.bf16.gmra.mxu0 %v187
  %v333 = vpop.f32.mrf.mxu0
  %v334 = vadd.f32 %v59, %v333
  %v335 = vpop.f32.mrf.mxu0
  %v336 = vpop.f32.mrf.mxu0
  %v337 = vadd.f32 %v59, %v336
  %v338 = vpop.f32.mrf.mxu0
  %339 = vmatprep.mubr.bf16.mxu0 0
  %340 = vmatmul.mubr.bf16.gmra.mxu0 %v190
  %v341 = vpop.f32.mrf.mxu0
  %v342 = vadd.f32 %v59, %v341
  %v343 = vpop.f32.mrf.mxu0
  %v344 = vpop.f32.mrf.mxu0
  %v345 = vadd.f32 %v59, %v344
  %v346 = vpop.f32.mrf.mxu0
  %347 = vmatprep.mubr.bf16.mxu0 0
  %348 = vmatmul.mubr.bf16.gmra.mxu0 %v193
  %v349 = vpop.f32.mrf.mxu0
  %v350 = vadd.f32 %v59, %v349
  %v351 = vpop.f32.mrf.mxu0
  %v352 = vpop.f32.mrf.mxu0
  %v353 = vadd.f32 %v59, %v352
  %v354 = vpop.f32.mrf.mxu0
  %355 = vdwg.mxu0
  %v356 = vmax.f32 %v230, 0.0
  %v357 = vmax.f32 %v233, 0.0
  %v358 = vmax.f32 %v238, 0.0
  %v359 = vmax.f32 %v241, 0.0
  %v360 = vmax.f32 %v246, 0.0
  %v361 = vmax.f32 %v249, 0.0
  %v362 = vmax.f32 %v254, 0.0
  %v363 = vmax.f32 %v257, 0.0
  %v364 = vmax.f32 %v262, 0.0
  %v365 = vmax.f32 %v265, 0.0
  %v366 = vmax.f32 %v270, 0.0
  %v367 = vmax.f32 %v273, 0.0
  %v368 = vmax.f32 %v278, 0.0
  %v369 = vmax.f32 %v281, 0.0
  %v370 = vmax.f32 %v286, 0.0
  %v371 = vmax.f32 %v289, 0.0
  %v372 = vmax.f32 %v294, 0.0
  %v373 = vmax.f32 %v297, 0.0
  %v374 = vmax.f32 %v302, 0.0
  %v375 = vmax.f32 %v305, 0.0
  %v376 = vmax.f32 %v310, 0.0
  %v377 = vmax.f32 %v313, 0.0
  %v378 = vmax.f32 %v318, 0.0
  %v379 = vmax.f32 %v321, 0.0
  %v380 = vmax.f32 %v326, 0.0
  %v381 = vmax.f32 %v329, 0.0
  %v382 = vmax.f32 %v334, 0.0
  %v383 = vmax.f32 %v337, 0.0
  %v384 = vmax.f32 %v342, 0.0
  %v385 = vmax.f32 %v345, 0.0
  %v386 = vmax.f32 %v350, 0.0
  %v387 = vmax.f32 %v353, 0.0
  %v388 = vpack.c.bf16 %v357, %v356
  %v389 = vpack.c.bf16 %v359, %v358
  %v390 = vpack.c.bf16 %v361, %v360
  %v391 = vpack.c.bf16 %v363, %v362
  %v392 = vpack.c.bf16 %v365, %v364
  %v393 = vpack.c.bf16 %v367, %v366
  %v394 = vpack.c.bf16 %v369, %v368
  %v395 = vpack.c.bf16 %v371, %v370
  %v396 = vpack.c.bf16 %v373, %v372
  %v397 = vpack.c.bf16 %v375, %v374
  %v398 = vpack.c.bf16 %v377, %v376
  %v399 = vpack.c.bf16 %v379, %v378
  %v400 = vpack.c.bf16 %v381, %v380
  %v401 = vpack.c.bf16 %v383, %v382
  %v402 = vpack.c.bf16 %v385, %v384
  %v403 = vpack.c.bf16 %v387, %v386
  %v404 = vld [vmem:[%s2] sm:$0xf]
  %v405 = vld [vmem:[%s2 + $0x4] sm:$0xf]
  %v406 = vld [vmem:[%s2 + $0x8] sm:$0xf]
  %v407 = vld [vmem:[%s2 + $0xc] sm:$0xf]
  %v408 = vld [vmem:[%s2 + $0x10] sm:$0xf]
  %v409 = vld [vmem:[%s2 + $0x14] sm:$0xf]
  %v410 = vld [vmem:[%s2 + $0x18] sm:$0xf]
  %v411 = vld [vmem:[%s2 + $0x1c] sm:$0xf]
  %v412 = vld [vmem:[%s2 + $0x20] sm:$0xf]
  %v413 = vld [vmem:[%s2 + $0x24] sm:$0xf]
  %v414 = vld [vmem:[%s2 + $0x28] sm:$0xf]
  %v415 = vld [vmem:[%s2 + $0x2c] sm:$0xf]
  %v416 = vld [vmem:[%s2 + $0x30] sm:$0xf]
  %v417 = vld [vmem:[%s2 + $0x34] sm:$0xf]
  %v418 = vld [vmem:[%s2 + $0x38] sm:$0xf]
  %v419 = vld [vmem:[%s2 + $0x3c] sm:$0xf]
  %v420 = vlaneseq
  %v421 = vshrl.u32 %v420, 7
  %v422 = vsub.s32 1, %v421
  %v423 = vrot.slane %v21, %v422
  %v440 = vunpack.c.l.b16 %v404
  %v441 = vunpack.c.l.b16 %v405
  %v442 = vunpack.c.l.b16 %v406
  %v443 = vunpack.c.l.b16 %v407
  %v444 = vunpack.c.l.b16 %v408
  %v445 = vunpack.c.l.b16 %v409
  %v446 = vunpack.c.l.b16 %v410
  %v447 = vunpack.c.l.b16 %v411
  %v448 = vunpack.c.l.b16 %v412
  %v449 = vunpack.c.l.b16 %v413
  %v450 = vunpack.c.l.b16 %v414
  %v451 = vunpack.c.l.b16 %v415
  %v452 = vunpack.c.l.b16 %v416
  %v453 = vunpack.c.l.b16 %v417
  %v454 = vunpack.c.l.b16 %v418
  %v455 = vunpack.c.l.b16 %v419
  %v456 = vpack.c.b16 %v441, %v440
  %v457 = vpack.c.b16 %v443, %v442
  %v458 = vpack.c.b16 %v445, %v444
  %v459 = vpack.c.b16 %v447, %v446
  %v460 = vpack.c.b16 %v449, %v448
  %v461 = vpack.c.b16 %v451, %v450
  %v462 = vpack.c.b16 %v453, %v452
  %v463 = vpack.c.b16 %v455, %v454
  %472 = vmatprep.subr.bf16.mxu0 0
  %473 = vmatpush1.bf16.msra.mxu0 %v463
  %474 = vmatprep.subr.bf16.mxu0 0
  %475 = vmatpush1.bf16.msra.mxu0 %v462
  %476 = vmatprep.subr.bf16.mxu0 0
  %477 = vmatpush1.bf16.msra.mxu0 %v461
  %478 = vmatprep.subr.bf16.mxu0 0
  %479 = vmatpush1.bf16.msra.mxu0 %v460
  %480 = vmatprep.subr.bf16.mxu0 0
  %481 = vmatpush1.bf16.msra.mxu0 %v459
  %482 = vmatprep.subr.bf16.mxu0 0
  %483 = vmatpush1.bf16.msra.mxu0 %v458
  %484 = vmatprep.subr.bf16.mxu0 0
  %485 = vmatpush1.bf16.msra.mxu0 %v457
  %486 = vmatprep.subr.bf16.mxu0 0
  %487 = vmatpush1.bf16.msra.mxu0 %v456
  %488 = vmatprep.subr.bf16.mxu0 0
  %489 = vmatpush2.bf16.msra.mxu0 0
  %490 = vmatprep.subr.bf16.mxu0 0
  %491 = vmatpush2.bf16.msra.mxu0 0
  %492 = vmatprep.subr.bf16.mxu0 0
  %493 = vmatpush2.bf16.msra.mxu0 0
  %494 = vmatprep.subr.bf16.mxu0 0
  %495 = vmatpush2.bf16.msra.mxu0 0
  %496 = vmatprep.subr.bf16.mxu0 0
  %497 = vmatpush2.bf16.msra.mxu0 0
  %498 = vmatprep.subr.bf16.mxu0 0
  %499 = vmatpush2.bf16.msra.mxu0 0
  %500 = vmatprep.subr.bf16.mxu0 0
  %501 = vmatpush2.bf16.msra.mxu0 0
  %502 = vmatprep.subr.bf16.mxu0 0
  %503 = vmatpush2.bf16.msra.mxu0 0
  %504 = vmatprep.mubr.bf16.mxu0 0
  %505 = vmatmul.mubr.bf16.gmra.mxu0 %v388
  %v506 = vpop.f32.mrf.mxu0
  %v507 = vadd.f32 %v423, %v506
  %v508 = vpop.f32.mrf.mxu0
  %v509 = vpop.f32.mrf.mxu0
  %v510 = vadd.f32 %v423, %v509
  %v511 = vpop.f32.mrf.mxu0
  %512 = vmatprep.mubr.bf16.mxu0 0
  %513 = vmatmul.mubr.bf16.gmra.mxu0 %v389
  %v514 = vpop.f32.mrf.mxu0
  %v515 = vadd.f32 %v423, %v514
  %v516 = vpop.f32.mrf.mxu0
  %v517 = vpop.f32.mrf.mxu0
  %v518 = vadd.f32 %v423, %v517
  %v519 = vpop.f32.mrf.mxu0
  %520 = vmatprep.mubr.bf16.mxu0 0
  %521 = vmatmul.mubr.bf16.gmra.mxu0 %v390
  %v522 = vpop.f32.mrf.mxu0
  %v523 = vadd.f32 %v423, %v522
  %v524 = vpop.f32.mrf.mxu0
  %v525 = vpop.f32.mrf.mxu0
  %v526 = vadd.f32 %v423, %v525
  %v527 = vpop.f32.mrf.mxu0
  %528 = vmatprep.mubr.bf16.mxu0 0
  %529 = vmatmul.mubr.bf16.gmra.mxu0 %v391
  %v530 = vpop.f32.mrf.mxu0
  %v531 = vadd.f32 %v423, %v530
  %v532 = vpop.f32.mrf.mxu0
  %v533 = vpop.f32.mrf.mxu0
  %v534 = vadd.f32 %v423, %v533
  %v535 = vpop.f32.mrf.mxu0
  %536 = vmatprep.mubr.bf16.mxu0 0
  %537 = vmatmul.mubr.bf16.gmra.mxu0 %v392
  %v538 = vpop.f32.mrf.mxu0
  %v539 = vadd.f32 %v423, %v538
  %v540 = vpop.f32.mrf.mxu0
  %v541 = vpop.f32.mrf.mxu0
  %v542 = vadd.f32 %v423, %v541
  %v543 = vpop.f32.mrf.mxu0
  %544 = vmatprep.mubr.bf16.mxu0 0
  %545 = vmatmul.mubr.bf16.gmra.mxu0 %v393
  %v546 = vpop.f32.mrf.mxu0
  %v547 = vadd.f32 %v423, %v546
  %v548 = vpop.f32.mrf.mxu0
  %v549 = vpop.f32.mrf.mxu0
  %v550 = vadd.f32 %v423, %v549
  %v551 = vpop.f32.mrf.mxu0
  %552 = vmatprep.mubr.bf16.mxu0 0
  %553 = vmatmul.mubr.bf16.gmra.mxu0 %v394
  %v554 = vpop.f32.mrf.mxu0
  %v555 = vadd.f32 %v423, %v554
  %v556 = vpop.f32.mrf.mxu0
  %v557 = vpop.f32.mrf.mxu0
  %v558 = vadd.f32 %v423, %v557
  %v559 = vpop.f32.mrf.mxu0
  %560 = vmatprep.mubr.bf16.mxu0 0
  %561 = vmatmul.mubr.bf16.gmra.mxu0 %v395
  %v562 = vpop.f32.mrf.mxu0
  %v563 = vadd.f32 %v423, %v562
  %v564 = vpop.f32.mrf.mxu0
  %v565 = vpop.f32.mrf.mxu0
  %v566 = vadd.f32 %v423, %v565
  %v567 = vpop.f32.mrf.mxu0
  %568 = vmatprep.mubr.bf16.mxu0 0
  %569 = vmatmul.mubr.bf16.gmra.mxu0 %v396
  %v570 = vpop.f32.mrf.mxu0
  %v571 = vadd.f32 %v423, %v570
  %v572 = vpop.f32.mrf.mxu0
  %v573 = vpop.f32.mrf.mxu0
  %v574 = vadd.f32 %v423, %v573
  %v575 = vpop.f32.mrf.mxu0
  %576 = vmatprep.mubr.bf16.mxu0 0
  %577 = vmatmul.mubr.bf16.gmra.mxu0 %v397
  %v578 = vpop.f32.mrf.mxu0
  %v579 = vadd.f32 %v423, %v578
  %v580 = vpop.f32.mrf.mxu0
  %v581 = vpop.f32.mrf.mxu0
  %v582 = vadd.f32 %v423, %v581
  %v583 = vpop.f32.mrf.mxu0
  %584 = vmatprep.mubr.bf16.mxu0 0
  %585 = vmatmul.mubr.bf16.gmra.mxu0 %v398
  %v586 = vpop.f32.mrf.mxu0
  %v587 = vadd.f32 %v423, %v586
  %v588 = vpop.f32.mrf.mxu0
  %v589 = vpop.f32.mrf.mxu0
  %v590 = vadd.f32 %v423, %v589
  %v591 = vpop.f32.mrf.mxu0
  %592 = vmatprep.mubr.bf16.mxu0 0
  %593 = vmatmul.mubr.bf16.gmra.mxu0 %v399
  %v594 = vpop.f32.mrf.mxu0
  %v595 = vadd.f32 %v423, %v594
  %v596 = vpop.f32.mrf.mxu0
  %v597 = vpop.f32.mrf.mxu0
  %v598 = vadd.f32 %v423, %v597
  %v599 = vpop.f32.mrf.mxu0
  %600 = vmatprep.mubr.bf16.mxu0 0
  %601 = vmatmul.mubr.bf16.gmra.mxu0 %v400
  %v602 = vpop.f32.mrf.mxu0
  %v603 = vadd.f32 %v423, %v602
  %v604 = vpop.f32.mrf.mxu0
  %v605 = vpop.f32.mrf.mxu0
  %v606 = vadd.f32 %v423, %v605
  %v607 = vpop.f32.mrf.mxu0
  %608 = vmatprep.mubr.bf16.mxu0 0
  %609 = vmatmul.mubr.bf16.gmra.mxu0 %v401
  %v610 = vpop.f32.mrf.mxu0
  %v611 = vadd.f32 %v423, %v610
  %v612 = vpop.f32.mrf.mxu0
  %v613 = vpop.f32.mrf.mxu0
  %v614 = vadd.f32 %v423, %v613
  %v615 = vpop.f32.mrf.mxu0
  %616 = vmatprep.mubr.bf16.mxu0 0
  %617 = vmatmul.mubr.bf16.gmra.mxu0 %v402
  %v618 = vpop.f32.mrf.mxu0
  %v619 = vadd.f32 %v423, %v618
  %v620 = vpop.f32.mrf.mxu0
  %v621 = vpop.f32.mrf.mxu0
  %v622 = vadd.f32 %v423, %v621
  %v623 = vpop.f32.mrf.mxu0
  %624 = vmatprep.mubr.bf16.mxu0 0
  %625 = vmatmul.mubr.bf16.gmra.mxu0 %v403
  %v626 = vpop.f32.mrf.mxu0
  %v627 = vadd.f32 %v423, %v626
  %v628 = vpop.f32.mrf.mxu0
  %v629 = vpop.f32.mrf.mxu0
  %v630 = vadd.f32 %v423, %v629
  %v631 = vpop.f32.mrf.mxu0
  %632 = vdwg.mxu0
  %v633 = vmax.f32 %v507, 0.0
  %v634 = vmax.f32 %v510, 0.0
  %v635 = vmax.f32 %v515, 0.0
  %v636 = vmax.f32 %v518, 0.0
  %v637 = vmax.f32 %v523, 0.0
  %v638 = vmax.f32 %v526, 0.0
  %v639 = vmax.f32 %v531, 0.0
  %v640 = vmax.f32 %v534, 0.0
  %v641 = vmax.f32 %v539, 0.0
  %v642 = vmax.f32 %v542, 0.0
  %v643 = vmax.f32 %v547, 0.0
  %v644 = vmax.f32 %v550, 0.0
  %v645 = vmax.f32 %v555, 0.0
  %v646 = vmax.f32 %v558, 0.0
  %v647 = vmax.f32 %v563, 0.0
  %v648 = vmax.f32 %v566, 0.0
  %v649 = vmax.f32 %v571, 0.0
  %v650 = vmax.f32 %v574, 0.0
  %v651 = vmax.f32 %v579, 0.0
  %v652 = vmax.f32 %v582, 0.0
  %v653 = vmax.f32 %v587, 0.0
  %v654 = vmax.f32 %v590, 0.0
  %v655 = vmax.f32 %v595, 0.0
  %v656 = vmax.f32 %v598, 0.0
  %v657 = vmax.f32 %v603, 0.0
  %v658 = vmax.f32 %v606, 0.0
  %v659 = vmax.f32 %v611, 0.0
  %v660 = vmax.f32 %v614, 0.0
  %v661 = vmax.f32 %v619, 0.0
  %v662 = vmax.f32 %v622, 0.0
  %v663 = vmax.f32 %v627, 0.0
  %v664 = vmax.f32 %v630, 0.0
  %v665 = vpack.c.bf16 %v634, %v633
  %v666 = vpack.c.bf16 %v636, %v635
  %v667 = vpack.c.bf16 %v638, %v637
  %v668 = vpack.c.bf16 %v640, %v639
  %v669 = vpack.c.bf16 %v642, %v641
  %v670 = vpack.c.bf16 %v644, %v643
  %v671 = vpack.c.bf16 %v646, %v645
  %v672 = vpack.c.bf16 %v648, %v647
  %v673 = vpack.c.bf16 %v650, %v649
  %v674 = vpack.c.bf16 %v652, %v651
  %v675 = vpack.c.bf16 %v654, %v653
  %v676 = vpack.c.bf16 %v656, %v655
  %v677 = vpack.c.bf16 %v658, %v657
  %v678 = vpack.c.bf16 %v660, %v659
  %v679 = vpack.c.bf16 %v662, %v661
  %v680 = vpack.c.bf16 %v664, %v663
  %v681 = vld [vmem:[%s3] sm:$0xf]
  %v682 = vld [vmem:[%s3 + $0x4] sm:$0xf]
  %v683 = vld [vmem:[%s3 + $0x8] sm:$0xf]
  %v684 = vld [vmem:[%s3 + $0xc] sm:$0xf]
  %v685 = vld [vmem:[%s3 + $0x10] sm:$0xf]
  %v686 = vld [vmem:[%s3 + $0x14] sm:$0xf]
  %v687 = vld [vmem:[%s3 + $0x18] sm:$0xf]
  %v688 = vld [vmem:[%s3 + $0x1c] sm:$0xf]
  %v689 = vld [vmem:[%s3 + $0x20] sm:$0xf]
  %v690 = vld [vmem:[%s3 + $0x24] sm:$0xf]
  %v691 = vld [vmem:[%s3 + $0x28] sm:$0xf]
  %v692 = vld [vmem:[%s3 + $0x2c] sm:$0xf]
  %v693 = vld [vmem:[%s3 + $0x30] sm:$0xf]
  %v694 = vld [vmem:[%s3 + $0x34] sm:$0xf]
  %v695 = vld [vmem:[%s3 + $0x38] sm:$0xf]
  %v696 = vld [vmem:[%s3 + $0x3c] sm:$0xf]
  %v697 = vlaneseq
  %v698 = vshrl.u32 %v697, 7
  %v699 = vsub.s32 2, %v698
  %v700 = vrot.slane %v21, %v699
  %v717 = vunpack.c.l.b16 %v681
  %v718 = vunpack.c.l.b16 %v682
  %v719 = vunpack.c.l.b16 %v683
  %v720 = vunpack.c.l.b16 %v684
  %v721 = vunpack.c.l.b16 %v685
  %v722 = vunpack.c.l.b16 %v686
  %v723 = vunpack.c.l.b16 %v687
  %v724 = vunpack.c.l.b16 %v688
  %v725 = vunpack.c.l.b16 %v689
  %v726 = vunpack.c.l.b16 %v690
  %v727 = vunpack.c.l.b16 %v691
  %v728 = vunpack.c.l.b16 %v692
  %v729 = vunpack.c.l.b16 %v693
  %v730 = vunpack.c.l.b16 %v694
  %v731 = vunpack.c.l.b16 %v695
  %v732 = vunpack.c.l.b16 %v696
  %v733 = vpack.c.b16 %v718, %v717
  %v734 = vpack.c.b16 %v720, %v719
  %v735 = vpack.c.b16 %v722, %v721
  %v736 = vpack.c.b16 %v724, %v723
  %v737 = vpack.c.b16 %v726, %v725
  %v738 = vpack.c.b16 %v728, %v727
  %v739 = vpack.c.b16 %v730, %v729
  %v740 = vpack.c.b16 %v732, %v731
  %749 = vmatprep.subr.bf16.mxu0 0
  %750 = vmatpush1.bf16.msra.mxu0 %v740
  %751 = vmatprep.subr.bf16.mxu0 0
  %752 = vmatpush1.bf16.msra.mxu0 %v739
  %753 = vmatprep.subr.bf16.mxu0 0
  %754 = vmatpush1.bf16.msra.mxu0 %v738
  %755 = vmatprep.subr.bf16.mxu0 0
  %756 = vmatpush1.bf16.msra.mxu0 %v737
  %757 = vmatprep.subr.bf16.mxu0 0
  %758 = vmatpush1.bf16.msra.mxu0 %v736
  %759 = vmatprep.subr.bf16.mxu0 0
  %760 = vmatpush1.bf16.msra.mxu0 %v735
  %761 = vmatprep.subr.bf16.mxu0 0
  %762 = vmatpush1.bf16.msra.mxu0 %v734
  %763 = vmatprep.subr.bf16.mxu0 0
  %764 = vmatpush1.bf16.msra.mxu0 %v733
  %765 = vmatprep.subr.bf16.mxu0 0
  %766 = vmatpush2.bf16.msra.mxu0 0
  %767 = vmatprep.subr.bf16.mxu0 0
  %768 = vmatpush2.bf16.msra.mxu0 0
  %769 = vmatprep.subr.bf16.mxu0 0
  %770 = vmatpush2.bf16.msra.mxu0 0
  %771 = vmatprep.subr.bf16.mxu0 0
  %772 = vmatpush2.bf16.msra.mxu0 0
  %773 = vmatprep.subr.bf16.mxu0 0
  %774 = vmatpush2.bf16.msra.mxu0 0
  %775 = vmatprep.subr.bf16.mxu0 0
  %776 = vmatpush2.bf16.msra.mxu0 0
  %777 = vmatprep.subr.bf16.mxu0 0
  %778 = vmatpush2.bf16.msra.mxu0 0
  %779 = vmatprep.subr.bf16.mxu0 0
  %780 = vmatpush2.bf16.msra.mxu0 0
  %781 = vmatprep.mubr.bf16.mxu0 0
  %782 = vmatmul.mubr.bf16.gmra.mxu0 %v665
  %v783 = vpop.f32.mrf.mxu0
  %v784 = vadd.f32 %v700, %v783
  %v785 = vpop.f32.mrf.mxu0
  %v786 = vpop.f32.mrf.mxu0
  %v787 = vadd.f32 %v700, %v786
  %v788 = vpop.f32.mrf.mxu0
  %789 = vmatprep.mubr.bf16.mxu0 0
  %790 = vmatmul.mubr.bf16.gmra.mxu0 %v666
  %v791 = vpop.f32.mrf.mxu0
  %v792 = vadd.f32 %v700, %v791
  %v793 = vpop.f32.mrf.mxu0
  %v794 = vpop.f32.mrf.mxu0
  %v795 = vadd.f32 %v700, %v794
  %v796 = vpop.f32.mrf.mxu0
  %797 = vmatprep.mubr.bf16.mxu0 0
  %798 = vmatmul.mubr.bf16.gmra.mxu0 %v667
  %v799 = vpop.f32.mrf.mxu0
  %v800 = vadd.f32 %v700, %v799
  %v801 = vpop.f32.mrf.mxu0
  %v802 = vpop.f32.mrf.mxu0
  %v803 = vadd.f32 %v700, %v802
  %v804 = vpop.f32.mrf.mxu0
  %805 = vmatprep.mubr.bf16.mxu0 0
  %806 = vmatmul.mubr.bf16.gmra.mxu0 %v668
  %v807 = vpop.f32.mrf.mxu0
  %v808 = vadd.f32 %v700, %v807
  %v809 = vpop.f32.mrf.mxu0
  %v810 = vpop.f32.mrf.mxu0
  %v811 = vadd.f32 %v700, %v810
  %v812 = vpop.f32.mrf.mxu0
  %813 = vmatprep.mubr.bf16.mxu0 0
  %814 = vmatmul.mubr.bf16.gmra.mxu0 %v669
  %v815 = vpop.f32.mrf.mxu0
  %v816 = vadd.f32 %v700, %v815
  %v817 = vpop.f32.mrf.mxu0
  %v818 = vpop.f32.mrf.mxu0
  %v819 = vadd.f32 %v700, %v818
  %v820 = vpop.f32.mrf.mxu0
  %821 = vmatprep.mubr.bf16.mxu0 0
  %822 = vmatmul.mubr.bf16.gmra.mxu0 %v670
  %v823 = vpop.f32.mrf.mxu0
  %v824 = vadd.f32 %v700, %v823
  %v825 = vpop.f32.mrf.mxu0
  %v826 = vpop.f32.mrf.mxu0
  %v827 = vadd.f32 %v700, %v826
  %v828 = vpop.f32.mrf.mxu0
  %829 = vmatprep.mubr.bf16.mxu0 0
  %830 = vmatmul.mubr.bf16.gmra.mxu0 %v671
  %v831 = vpop.f32.mrf.mxu0
  %v832 = vadd.f32 %v700, %v831
  %v833 = vpop.f32.mrf.mxu0
  %v834 = vpop.f32.mrf.mxu0
  %v835 = vadd.f32 %v700, %v834
  %v836 = vpop.f32.mrf.mxu0
  %837 = vmatprep.mubr.bf16.mxu0 0
  %838 = vmatmul.mubr.bf16.gmra.mxu0 %v672
  %v839 = vpop.f32.mrf.mxu0
  %v840 = vadd.f32 %v700, %v839
  %v841 = vpop.f32.mrf.mxu0
  %v842 = vpop.f32.mrf.mxu0
  %v843 = vadd.f32 %v700, %v842
  %v844 = vpop.f32.mrf.mxu0
  %845 = vmatprep.mubr.bf16.mxu0 0
  %846 = vmatmul.mubr.bf16.gmra.mxu0 %v673
  %v847 = vpop.f32.mrf.mxu0
  %v848 = vadd.f32 %v700, %v847
  %v849 = vpop.f32.mrf.mxu0
  %v850 = vpop.f32.mrf.mxu0
  %v851 = vadd.f32 %v700, %v850
  %v852 = vpop.f32.mrf.mxu0
  %853 = vmatprep.mubr.bf16.mxu0 0
  %854 = vmatmul.mubr.bf16.gmra.mxu0 %v674
  %v855 = vpop.f32.mrf.mxu0
  %v856 = vadd.f32 %v700, %v855
  %v857 = vpop.f32.mrf.mxu0
  %v858 = vpop.f32.mrf.mxu0
  %v859 = vadd.f32 %v700, %v858
  %v860 = vpop.f32.mrf.mxu0
  %861 = vmatprep.mubr.bf16.mxu0 0
  %862 = vmatmul.mubr.bf16.gmra.mxu0 %v675
  %v863 = vpop.f32.mrf.mxu0
  %v864 = vadd.f32 %v700, %v863
  %v865 = vpop.f32.mrf.mxu0
  %v866 = vpop.f32.mrf.mxu0
  %v867 = vadd.f32 %v700, %v866
  %v868 = vpop.f32.mrf.mxu0
  %869 = vmatprep.mubr.bf16.mxu0 0
  %870 = vmatmul.mubr.bf16.gmra.mxu0 %v676
  %v871 = vpop.f32.mrf.mxu0
  %v872 = vadd.f32 %v700, %v871
  %v873 = vpop.f32.mrf.mxu0
  %v874 = vpop.f32.mrf.mxu0
  %v875 = vadd.f32 %v700, %v874
  %v876 = vpop.f32.mrf.mxu0
  %877 = vmatprep.mubr.bf16.mxu0 0
  %878 = vmatmul.mubr.bf16.gmra.mxu0 %v677
  %v879 = vpop.f32.mrf.mxu0
  %v880 = vadd.f32 %v700, %v879
  %v881 = vpop.f32.mrf.mxu0
  %v882 = vpop.f32.mrf.mxu0
  %v883 = vadd.f32 %v700, %v882
  %v884 = vpop.f32.mrf.mxu0
  %885 = vmatprep.mubr.bf16.mxu0 0
  %886 = vmatmul.mubr.bf16.gmra.mxu0 %v678
  %v887 = vpop.f32.mrf.mxu0
  %v888 = vadd.f32 %v700, %v887
  %v889 = vpop.f32.mrf.mxu0
  %v890 = vpop.f32.mrf.mxu0
  %v891 = vadd.f32 %v700, %v890
  %v892 = vpop.f32.mrf.mxu0
  %893 = vmatprep.mubr.bf16.mxu0 0
  %894 = vmatmul.mubr.bf16.gmra.mxu0 %v679
  %v895 = vpop.f32.mrf.mxu0
  %v896 = vadd.f32 %v700, %v895
  %v897 = vpop.f32.mrf.mxu0
  %v898 = vpop.f32.mrf.mxu0
  %v899 = vadd.f32 %v700, %v898
  %v900 = vpop.f32.mrf.mxu0
  %901 = vmatprep.mubr.bf16.mxu0 0
  %902 = vmatmul.mubr.bf16.gmra.mxu0 %v680
  %v903 = vpop.f32.mrf.mxu0
  %v904 = vadd.f32 %v700, %v903
  %v905 = vpop.f32.mrf.mxu0
  %v906 = vpop.f32.mrf.mxu0
  %v907 = vadd.f32 %v700, %v906
  %v908 = vpop.f32.mrf.mxu0
  %909 = vdwg.mxu0
  %910 = vst [vmem:[%s5] sm:$0xff] %v784
  %911 = vst [vmem:[%s5 + $0x8] sm:$0xff] %v787
  %912 = vst [vmem:[%s5 + $0x10] sm:$0xff] %v792
  %913 = vst [vmem:[%s5 + $0x18] sm:$0xff] %v795
  %914 = vst [vmem:[%s5 + $0x20] sm:$0xff] %v800
  %915 = vst [vmem:[%s5 + $0x28] sm:$0xff] %v803
  %916 = vst [vmem:[%s5 + $0x30] sm:$0xff] %v808
  %917 = vst [vmem:[%s5 + $0x38] sm:$0xff] %v811
  %918 = vst [vmem:[%s5 + $0x40] sm:$0xff] %v816
  %919 = vst [vmem:[%s5 + $0x48] sm:$0xff] %v819
  %920 = vst [vmem:[%s5 + $0x50] sm:$0xff] %v824
  %921 = vst [vmem:[%s5 + $0x58] sm:$0xff] %v827
  %922 = vst [vmem:[%s5 + $0x60] sm:$0xff] %v832
  %923 = vst [vmem:[%s5 + $0x68] sm:$0xff] %v835
  %924 = vst [vmem:[%s5 + $0x70] sm:$0xff] %v840
  %925 = vst [vmem:[%s5 + $0x78] sm:$0xff] %v843
  %926 = vst [vmem:[%s5 + $0x80] sm:$0xff] %v848
  %927 = vst [vmem:[%s5 + $0x88] sm:$0xff] %v851
  %928 = vst [vmem:[%s5 + $0x90] sm:$0xff] %v856
  %929 = vst [vmem:[%s5 + $0x98] sm:$0xff] %v859
  %930 = vst [vmem:[%s5 + $0xa0] sm:$0xff] %v864
  %931 = vst [vmem:[%s5 + $0xa8] sm:$0xff] %v867
  %932 = vst [vmem:[%s5 + $0xb0] sm:$0xff] %v872
  %933 = vst [vmem:[%s5 + $0xb8] sm:$0xff] %v875
  %934 = vst [vmem:[%s5 + $0xc0] sm:$0xff] %v880
  %935 = vst [vmem:[%s5 + $0xc8] sm:$0xff] %v883
  %936 = vst [vmem:[%s5 + $0xd0] sm:$0xff] %v888
  %937 = vst [vmem:[%s5 + $0xd8] sm:$0xff] %v891
  %938 = vst [vmem:[%s5 + $0xe0] sm:$0xff] %v896
  %939 = vst [vmem:[%s5 + $0xe8] sm:$0xff] %v899
  %940 = vst [vmem:[%s5 + $0xf0] sm:$0xff] %v904
  %941 = vst [vmem:[%s5 + $0xf8] sm:$0xff] %v907
  // Predicated region
  $region22: #{_dqn_forward_impl.1} parent=0 // pred_check
    _
  $region23: #{_dqn_forward_impl.1} parent=0 // pred_check_branch
    %943 = sbr.rel (0) target = $region25
  $region24: #{_dqn_forward_impl.1} parent=0 // pred_region
    _
  $region25: #{_dqn_forward_impl.1} parent=0 // pred_fallthru
    _
  // Predicated region
  $region26: #{_dqn_forward_impl.1} parent=0 // pred_check
    _
  $region27: #{_dqn_forward_impl.1} parent=0 // pred_check_branch
    %945 = sbr.rel (0) target = $region29
  $region28: #{_dqn_forward_impl.1} parent=0 // pred_region
    _
  $region29: #{_dqn_forward_impl.1} parent=0 // pred_fallthru
    _

</llo_original>
